<compile_context>
chip_gen: v5e
topology: v5e:2x2
jax: 0.10.0
libtpu: 0.0.40
codegen_flags: <defaults>
</compile_context>

<pallas_src>
import jax
import jax.numpy as jnp
from jax.experimental import pallas as pl
from jax.experimental.pallas import tpu as pltpu


def _round_up(x, m):
    return ((x + m - 1) // m) * m


def _choose_hw_tile(n_classes, hw):
    """Pick a lane-tile: multiple of 128, ~4 MiB of f32 logits per block."""
    hw128 = _round_up(hw, 128)
    max_lanes = max(128, (4 * 1024 * 1024) // (4 * n_classes))
    tile = min(hw128, 32 * 1024, max_lanes)
    return max(128, (tile // 128) * 128)


def _make_miou_kernel(n_classes, hw_valid, hw_tile, needs_mask):
    """Kernel over grid (N, num_hw_tiles): accumulates per-class inter / union."""

    def kernel(x_ref, t_ref, inter_ref, union_ref):
        h = pl.program_id(1)
        n_hw = pl.num_programs(1)

        @pl.when(h == 0)
        def _():
            inter_ref[...] = jnp.zeros_like(inter_ref)
            union_ref[...] = jnp.zeros_like(union_ref)

        x = x_ref[0]                      # (C, HW_TILE) f32 logits
        t = t_ref[0]                      # (1, HW_TILE) int32 labels

        # Softmax over the class (sublane) axis.  Divide -> reciprocal on the
        # (1, HW_TILE) denominator row (EUP) + a single multiply per element.
        m = jnp.max(x, axis=0, keepdims=True)
        e = jnp.exp(x - m)
        denom = jnp.sum(e, axis=0, keepdims=True)
        p = e * pl.reciprocal(denom, approx=True)          # (C, HW_TILE)

        if needs_mask:
            # Zero out lanes beyond the true H*W extent (zero-padded tail).
            lane = jax.lax.broadcasted_iota(jnp.int32, (1, hw_tile), 1)
            valid = (h * hw_tile + lane) < hw_valid        # (1, HW_TILE)
            p = jnp.where(valid, p, 0.0)

        class_ids = jax.lax.broadcasted_iota(
            jnp.int32, (n_classes, hw_tile), 0)
        match = class_ids == t                             # one-hot as a mask
        prod = jnp.where(match, p, 0.0)                    # p * onehot
        pt = p + match.astype(jnp.float32)                 # p + onehot

        inter_ref[0] = inter_ref[0] + jnp.sum(prod, axis=1, keepdims=True)
        union_ref[0] = union_ref[0] + jnp.sum(pt, axis=1, keepdims=True)

        # union = sum(p) + sum(onehot) - inter  (algebraic; finalize once).
        @pl.when(h == n_hw - 1)
        def _():
            union_ref[0] = union_ref[0] - inter_ref[0]

    return kernel


def miou_loss(inputs, target, n_classes, hw_tile=None):
    """inputs: (N, C, H, W) float logits; target: (N, H, W) int labels."""
    N, C, H, W = inputs.shape
    assert C == n_classes
    HW = H * W

    if hw_tile is None:
        hw_tile = _choose_hw_tile(C, HW)
    num_hw = pl.cdiv(HW, hw_tile)
    HW_pad = num_hw * hw_tile
    needs_mask = HW_pad != HW

    x = inputs.reshape(N, C, HW).astype(jnp.float32)
    # TODO(synk): labels could be passed as int8 to cut HBM label bytes 4x on
    # HBM-bound v5e; kept int32 here for lowering robustness.
    t = target.reshape(N, 1, HW).astype(jnp.int32)
    if needs_mask:
        pad = HW_pad - HW
        x = jnp.pad(x, ((0, 0), (0, 0), (0, pad)))
        # Out-of-range class id in the padded tail -> one-hot contributes 0.
        t = jnp.pad(t, ((0, 0), (0, 0), (0, pad)), constant_values=n_classes)

    kernel = _make_miou_kernel(C, HW, hw_tile, needs_mask)

    inter, union = pl.pallas_call(
        kernel,
        out_shape=(
            jax.ShapeDtypeStruct((N, C, 1), jnp.float32),
            jax.ShapeDtypeStruct((N, C, 1), jnp.float32),
        ),
        grid_spec=pltpu.PrefetchScalarGridSpec(
            num_scalar_prefetch=0,
            grid=(N, num_hw),
            in_specs=[
                pl.BlockSpec((1, C, hw_tile), lambda n, h: (n, 0, h)),
                pl.BlockSpec((1, 1, hw_tile), lambda n, h: (n, 0, h)),
            ],
            out_specs=[
                pl.BlockSpec((1, C, 1), lambda n, h: (n, 0, 0)),
                pl.BlockSpec((1, C, 1), lambda n, h: (n, 0, 0)),
            ],
        ),
        compiler_params=pltpu.CompilerParams(
            dimension_semantics=("parallel", "arbitrary"),
            vmem_limit_bytes=32 * 1024 * 1024,
        ),
    )(x, t)

    iou = inter[:, :, 0] / union[:, :, 0]       # (N, C), same hazard as torch
    return 1.0 - jnp.mean(iou)


def _ref_miou_loss(inputs, target, n_classes):
    """Plain-JAX reference mirroring the PyTorch module."""
    p = jax.nn.softmax(inputs.astype(jnp.float32), axis=1)            # (N,C,H,W)
    onehot = (target[:, None, :, :] ==
              jnp.arange(n_classes)[None, :, None, None]).astype(jnp.float32)
    N = inputs.shape[0]
    inter = (p * onehot).reshape(N, n_classes, -1).sum(2)
    union = (p + onehot - p * onehot).reshape(N, n_classes, -1).sum(2)
    return 1.0 - jnp.mean(inter / union)


if __name__ == "__main__":
    key = jax.random.PRNGKey(0)

    # Test 1: small canonical shape, single spatial tile per batch element.
    N, C, H, W = 2, 4, 16, 16
    k1, k2, k3, k4 = jax.random.split(key, 4)
    inputs = jax.random.normal(k1, (N, C, H, W), dtype=jnp.float32)
    target = jax.random.randint(k2, (N, H, W), 0, C, dtype=jnp.int32)

    loss = jax.block_until_ready(miou_loss(inputs, target, n_classes=C))
    ref = _ref_miou_loss(inputs, target, n_classes=C)
    # approx=True reciprocal in the softmax costs a little precision vs the
    # exact-divide reference; tolerance set accordingly.
    assert jnp.allclose(loss, ref, atol=2e-3, rtol=2e-3), (loss, ref)

    # Test 2: ragged spatial extent + forced multi-tile accumulation + masking.
    N2, C2, H2, W2 = 2, 5, 17, 19            # HW = 323 -> 3 tiles of 128
    inputs2 = jax.random.normal(k3, (N2, C2, H2, W2), dtype=jnp.float32)
    target2 = jax.random.randint(k4, (N2, H2, W2), 0, C2, dtype=jnp.int32)

    loss2 = jax.block_until_ready(
        miou_loss(inputs2, target2, n_classes=C2, hw_tile=128))
    ref2 = _ref_miou_loss(inputs2, target2, n_classes=C2)
    assert jnp.allclose(loss2, ref2, atol=2e-3, rtol=2e-3), (loss2, ref2)

    print("KERNEL_OK")
</pallas_src>

<mosaic_0001>
module attributes {stable_mosaic.version = 11 : i64} {
  func.func @kernel(%arg0: i32, %arg1: i32, %arg2: memref<1x4x256xf32, #tpu.memory_space<vmem>>, %arg3: memref<1x1x256xi32, #tpu.memory_space<vmem>>, %arg4: memref<1x4x1xf32, #tpu.memory_space<vmem>>, %arg5: memref<1x4x1xf32, #tpu.memory_space<vmem>>) attributes {dimension_semantics = [#tpu.dimension_semantics<parallel>, #tpu.dimension_semantics<arbitrary>], iteration_bounds = array<i64: 2, 1>, scalar_prefetch = 0 : i64, scratch_operands = 0 : i64, tpu.core_type = #tpu.core_type<tc>, window_params = [{transform_indices = @transform_0, window_bounds = array<i64: 1, 4, 256>}, {transform_indices = @transform_1, window_bounds = array<i64: 1, 1, 256>}, {transform_indices = @transform_2, window_bounds = array<i64: 1, 4, 1>}, {transform_indices = @transform_3, window_bounds = array<i64: 1, 4, 1>}]} {
    %c0_i32 = arith.constant 0 : i32
    %0 = arith.cmpi eq, %arg1, %c0_i32 : i32
    %1 = arith.extui %0 : i1 to i32
    %c0_i32_0 = arith.constant 0 : i32
    %2 = arith.cmpi ne, %1, %c0_i32_0 : i32
    scf.if %2 {
      %cst_24 = arith.constant 0.000000e+00 : f32
      %44 = vector.broadcast %cst_24 : f32 to vector<1x4x1xf32>
      %c0_25 = arith.constant 0 : index
      %c0_26 = arith.constant 0 : index
      %c0_27 = arith.constant 0 : index
      %45 = vector.load %arg4[%c0_25, %c0_26, %c0_27] : memref<1x4x1xf32, #tpu.memory_space<vmem>>, vector<1x4x1xf32>
      tpu.vector_store %arg4[%c0_25, %c0_26, %c0_27], %44 {strides = array<i32>} : memref<1x4x1xf32, #tpu.memory_space<vmem>>, vector<1x4x1xf32>,
      %cst_28 = arith.constant 0.000000e+00 : f32
      %46 = vector.broadcast %cst_28 : f32 to vector<1x4x1xf32>
      %c0_29 = arith.constant 0 : index
      %c0_30 = arith.constant 0 : index
      %c0_31 = arith.constant 0 : index
      %47 = vector.load %arg5[%c0_29, %c0_30, %c0_31] : memref<1x4x1xf32, #tpu.memory_space<vmem>>, vector<1x4x1xf32>
      tpu.vector_store %arg5[%c0_29, %c0_30, %c0_31], %46 {strides = array<i32>} : memref<1x4x1xf32, #tpu.memory_space<vmem>>, vector<1x4x1xf32>,
    } else {
    }
    %c0 = arith.constant 0 : index
    %c0_1 = arith.constant 0 : index
    %c0_2 = arith.constant 0 : index
    %3 = vector.load %arg2[%c0, %c0_1, %c0_2] : memref<1x4x256xf32, #tpu.memory_space<vmem>>, vector<1x4x256xf32>
    %4 = vector.shape_cast %3 : vector<1x4x256xf32> to vector<4x256xf32>
    %c0_3 = arith.constant 0 : index
    %c0_4 = arith.constant 0 : index
    %c0_5 = arith.constant 0 : index
    %5 = vector.load %arg3[%c0_3, %c0_4, %c0_5] : memref<1x1x256xi32, #tpu.memory_space<vmem>>, vector<1x1x256xi32>
    %6 = vector.shape_cast %5 : vector<1x1x256xi32> to vector<1x256xi32>
    %cst = arith.constant dense<0xFF800000> : vector<256xf32>
    %7 = vector.multi_reduction <maximumf>, %4, %cst [0] : vector<4x256xf32> to vector<256xf32>
    %8 = vector.shape_cast %7 : vector<256xf32> to vector<1x256xf32>
    %9 = vector.broadcast %8 : vector<1x256xf32> to vector<4x256xf32>
    %10 = arith.subf %4, %9 : vector<4x256xf32>
    %11 = math.exp %10 : vector<4x256xf32>
    %cst_6 = arith.constant dense<0.000000e+00> : vector<256xf32>
    %12 = vector.multi_reduction <add>, %11, %cst_6 [0] : vector<4x256xf32> to vector<256xf32>
    %13 = vector.shape_cast %12 : vector<256xf32> to vector<1x256xf32>
    %14 = tpu.reciprocal %13 {approx = true} : vector<1x256xf32> -> vector<1x256xf32>
    %15 = vector.broadcast %14 : vector<1x256xf32> to vector<4x256xf32>
    %16 = arith.mulf %11, %15 : vector<4x256xf32>
    %17 = tpu.iota {dimensions = array<i32: 0>} : vector<4x256xi32>
    %18 = vector.broadcast %6 : vector<1x256xi32> to vector<4x256xi32>
    %19 = arith.cmpi eq, %17, %18 : vector<4x256xi32>
    %cst_7 = arith.constant 0.000000e+00 : f32
    %20 = vector.broadcast %cst_7 : f32 to vector<4x256xf32>
    %21 = arith.select %19, %16, %20 : vector<4x256xi1>, vector<4x256xf32>
    %22 = arith.extui %19 : vector<4x256xi1> to vector<4x256xi32>
    %23 = arith.sitofp %22 : vector<4x256xi32> to vector<4x256xf32>
    %24 = arith.addf %16, %23 : vector<4x256xf32>
    %c0_8 = arith.constant 0 : index
    %c0_9 = arith.constant 0 : index
    %c0_10 = arith.constant 0 : index
    %25 = vector.load %arg4[%c0_8, %c0_9, %c0_10] : memref<1x4x1xf32, #tpu.memory_space<vmem>>, vector<1x4x1xf32>
    %26 = vector.shape_cast %25 : vector<1x4x1xf32> to vector<4x1xf32>
    %cst_11 = arith.constant dense<0.000000e+00> : vector<4xf32>
    %27 = vector.multi_reduction <add>, %21, %cst_11 [1] : vector<4x256xf32> to vector<4xf32>
    %28 = vector.shape_cast %27 : vector<4xf32> to vector<4x1xf32>
    %29 = arith.addf %26, %28 : vector<4x1xf32>
    %c0_12 = arith.constant 0 : index
    %c0_13 = arith.constant 0 : index
    %c0_14 = arith.constant 0 : index
    %30 = vector.load %arg4[%c0_12, %c0_13, %c0_14] : memref<1x4x1xf32, #tpu.memory_space<vmem>>, vector<1x4x1xf32>
    %31 = vector.shape_cast %30 : vector<1x4x1xf32> to vector<4x1xf32>
    %32 = vector.shape_cast %29 : vector<4x1xf32> to vector<1x4x1xf32>
    tpu.vector_store %arg4[%c0_12, %c0_13, %c0_14], %32 {strides = array<i32>} : memref<1x4x1xf32, #tpu.memory_space<vmem>>, vector<1x4x1xf32>,
    %c0_15 = arith.constant 0 : index
    %c0_16 = arith.constant 0 : index
    %c0_17 = arith.constant 0 : index
    %33 = vector.load %arg5[%c0_15, %c0_16, %c0_17] : memref<1x4x1xf32, #tpu.memory_space<vmem>>, vector<1x4x1xf32>
    %34 = vector.shape_cast %33 : vector<1x4x1xf32> to vector<4x1xf32>
    %cst_18 = arith.constant dense<0.000000e+00> : vector<4xf32>
    %35 = vector.multi_reduction <add>, %24, %cst_18 [1] : vector<4x256xf32> to vector<4xf32>
    %36 = vector.shape_cast %35 : vector<4xf32> to vector<4x1xf32>
    %37 = arith.addf %34, %36 : vector<4x1xf32>
    %c0_19 = arith.constant 0 : index
    %c0_20 = arith.constant 0 : index
    %c0_21 = arith.constant 0 : index
    %38 = vector.load %arg5[%c0_19, %c0_20, %c0_21] : memref<1x4x1xf32, #tpu.memory_space<vmem>>, vector<1x4x1xf32>
    %39 = vector.shape_cast %38 : vector<1x4x1xf32> to vector<4x1xf32>
    %40 = vector.shape_cast %37 : vector<4x1xf32> to vector<1x4x1xf32>
    tpu.vector_store %arg5[%c0_19, %c0_20, %c0_21], %40 {strides = array<i32>} : memref<1x4x1xf32, #tpu.memory_space<vmem>>, vector<1x4x1xf32>,
    %c0_i32_22 = arith.constant 0 : i32
    %41 = arith.cmpi eq, %arg1, %c0_i32_22 : i32
    %42 = arith.extui %41 : i1 to i32
    %c0_i32_23 = arith.constant 0 : i32
    %43 = arith.cmpi ne, %42, %c0_i32_23 : i32
    scf.if %43 {
      %c0_24 = arith.constant 0 : index
      %c0_25 = arith.constant 0 : index
      %c0_26 = arith.constant 0 : index
      %44 = vector.load %arg5[%c0_24, %c0_25, %c0_26] : memref<1x4x1xf32, #tpu.memory_space<vmem>>, vector<1x4x1xf32>
      %45 = vector.shape_cast %44 : vector<1x4x1xf32> to vector<4x1xf32>
      %c0_27 = arith.constant 0 : index
      %c0_28 = arith.constant 0 : index
      %c0_29 = arith.constant 0 : index
      %46 = vector.load %arg4[%c0_27, %c0_28, %c0_29] : memref<1x4x1xf32, #tpu.memory_space<vmem>>, vector<1x4x1xf32>
      %47 = vector.shape_cast %46 : vector<1x4x1xf32> to vector<4x1xf32>
      %48 = arith.subf %45, %47 : vector<4x1xf32>
      %c0_30 = arith.constant 0 : index
      %c0_31 = arith.constant 0 : index
      %c0_32 = arith.constant 0 : index
      %49 = vector.load %arg5[%c0_30, %c0_31, %c0_32] : memref<1x4x1xf32, #tpu.memory_space<vmem>>, vector<1x4x1xf32>
      %50 = vector.shape_cast %49 : vector<1x4x1xf32> to vector<4x1xf32>
      %51 = vector.shape_cast %48 : vector<4x1xf32> to vector<1x4x1xf32>
      tpu.vector_store %arg5[%c0_30, %c0_31, %c0_32], %51 {strides = array<i32>} : memref<1x4x1xf32, #tpu.memory_space<vmem>>, vector<1x4x1xf32>,
    } else {
    }
    return
  }
  func.func @transform_0(%arg0: i32, %arg1: i32) -> (i32, i32, i32) {
    %c0_i32 = arith.constant 0 : i32
    %c0_i32_0 = arith.constant 0 : i32
    return %arg0, %c0_i32, %arg1 : i32, i32, i32
  }
  func.func @transform_1(%arg0: i32, %arg1: i32) -> (i32, i32, i32) {
    %c0_i32 = arith.constant 0 : i32
    %c0_i32_0 = arith.constant 0 : i32
    return %arg0, %c0_i32, %arg1 : i32, i32, i32
  }
  func.func @transform_2(%arg0: i32, %arg1: i32) -> (i32, i32, i32) {
    %c0_i32 = arith.constant 0 : i32
    %c0_i32_0 = arith.constant 0 : i32
    %c0_i32_1 = arith.constant 0 : i32
    return %arg0, %c0_i32, %c0_i32_0 : i32, i32, i32
  }
  func.func @transform_3(%arg0: i32, %arg1: i32) -> (i32, i32, i32) {
    %c0_i32 = arith.constant 0 : i32
    %c0_i32_0 = arith.constant 0 : i32
    %c0_i32_1 = arith.constant 0 : i32
    return %arg0, %c0_i32, %c0_i32_0 : i32, i32, i32
  }
}

</mosaic_0001>

<llo_original>
// kernel: tpu_custom_call.1
$region0: #{tpu_custom_call.1}
  #allocation0 [shape = 'u32[]', space=smem, size = 0x4, offset = 0x4, fixed_abs, tag = 'smem constant byte address 0x4 - core index']
  #allocation1 [shape = 'u32[72,128]{1,0:T(1,128)}', space=vmem, size = 0x9000, scoped, tag = 'internal scratch']
  %s0 = inlined_call_operand.hbm [shape: f32[2,4,256], index: 0, kind: input, shape index: {}]
  %s1 = inlined_call_operand.hbm [shape: s32[2,1,256], index: 1, kind: input, shape index: {}]
  %s2 = inlined_call_operand.vmem [shape: f32[2,4,1], index: 2, kind: output, shape index: {0}]
  %s3 = inlined_call_operand.vmem [shape: f32[2,4,1], index: 3, kind: output, shape index: {1}]
  %4 = xla_tuple %s2, %s3
  %s5 = sld [smem:[#allocation0]]
  $region65: #{tpu_custom_call.1} parent=0
    _
  %s7 = ssub.s32 1, %s5
  %s8 = scalar_select 0, %s7, %s5
  $region1: #{tpu_custom_call.1} parent=0
    #allocation2 [shape = 'u8[8192]{0}', space=vmem, size = 0x2000, scoped, tag = 'input window, operand 0']
    #allocation3 [shape = 's32[2]{0}', space=sflag, size = 0x8, scoped, tag = 'scoped memory for tpu_custom_call.1']
    #allocation4 [shape = 'u8[2048]{0}', space=vmem, size = 0x800, scoped, tag = 'input window, operand 1']
    #allocation5 [shape = 's32[2]{0}', space=sflag, size = 0x8, scoped, tag = 'scoped memory for tpu_custom_call.1']
    %9 = vsyncpa [#allocation3], 0
    %s10 = scalar_lea.sflag [#allocation3], 1
    %11 = vsyncpa %s10, 0
    %12 = vsyncpa [#allocation5], 0
    %s13 = scalar_lea.sflag [#allocation5], 1
    %14 = vsyncpa %s13, 0
    loop: start=0, step=1, limit=4
    $region2: #{tpu_custom_call.1} parent=1 // loop_pre_header
      _
    $region3: #{tpu_custom_call.1} parent=1 // loop_header
      %s16 = sphi 0, %s20
      %p17 = scmp.ge.s32.totalorder %s16, 4
      %s23 = sphi 0, %s35
      %s24 = sphi 0, %s31
      %s25 = sphi 0, %s23
      %s26 = sphi 0, %s24
      %s27 = sphi 0, %s25
      %s28 = sphi 0, %s26
      %s40 = sphi 0, %s42
      %s43 = sphi 0, %s40
      %s44 = sphi 0, %s43
      %s60 = sphi 0, %s44
      %s68 = sphi 0, %s70
      %s71 = sphi 0, %s68
      %s72 = sphi 0, %s71
      %s88 = sphi 0, %s72
      %s94 = sphi 0, %s96
      %s97 = sphi 0, %s94
      %s98 = sphi 0, %s97
      %s114 = sphi 0, %s98
      %s120 = sphi 0, %s122
      %s123 = sphi 0, %s120
      %s124 = sphi 0, %s123
      %s140 = sphi 0, %s124
    $region4: #{tpu_custom_call.1} parent=1 // loop_header_branch
      %19 = sbr.rel (%p17) target = $region8
    $region5: #{tpu_custom_call.1} parent=1 // loop_body
      %s21 = ssub.s32 %s16, 1
      %s22 = ssub.s32 %s16, 2
      %s29 = sadd.s32 1, %s24
      %p30 = scmp.ge.s32.totalorder %s29, 1
      %s31 = scalar_select %p30, 0, %s29
      %s32 = sadd.s32 1, %s23
      %s33 = scalar_select %p30, %s32, %s23
      %p34 = scmp.ge.s32.totalorder %s33, 2
      %s35 = scalar_select %p34, 0, %s33
      %s36 = ssub.s32 %s23, %s35
      %s37 = ssub.s32 %s24, %s31
      %s38 = sor.u32 %s36, %s37
      %p39 = scmp.eq.s32.totalorder %s38, 0
      %s41 = sadd.s32 %s40, 1
      %s42 = scalar_select %p39, %s40, %s41
      %p45 = pneg %p39
      %p46 = scmp.eq.s32.totalorder %s16, 1
      %p47 = por %p45, %p46
      %p48 = scmp.ne.s32.totalorder %s40, %s43
      %p49 = scmp.eq.s32.totalorder %s16, 0
      %p50 = por %p48, %p49
      %p51 = scmp.ne.s32.totalorder %s40, %s43
      %p52 = scmp.eq.s32.totalorder %s21, 1
      %p53 = por %p51, %p52
      %p54 = scmp.ne.s32.totalorder %s43, %s44
      %p55 = scmp.eq.s32.totalorder %s21, 0
      %p56 = por %p54, %p55
      %p57 = scmp.ne.s32.totalorder %s43, %s44
      %p58 = scmp.eq.s32.totalorder %s22, 1
      %p59 = por %p57, %p58
      %p61 = scmp.ne.s32.totalorder %s44, %s60
      %p62 = scmp.eq.s32.totalorder %s22, 0
      %p63 = por %p61, %p62
      %s64 = ssub.s32 %s23, %s35
      %s65 = ssub.s32 %s24, %s31
      %s66 = sor.u32 %s64, %s65
      %p67 = scmp.eq.s32.totalorder %s66, 0
      %s69 = sadd.s32 %s68, 1
      %s70 = scalar_select %p67, %s68, %s69
      %p73 = pneg %p67
      %p74 = scmp.eq.s32.totalorder %s16, 1
      %p75 = por %p73, %p74
      %p76 = scmp.ne.s32.totalorder %s68, %s71
      %p77 = scmp.eq.s32.totalorder %s16, 0
      %p78 = por %p76, %p77
      %p79 = scmp.ne.s32.totalorder %s68, %s71
      %p80 = scmp.eq.s32.totalorder %s21, 1
      %p81 = por %p79, %p80
      %p82 = scmp.ne.s32.totalorder %s71, %s72
      %p83 = scmp.eq.s32.totalorder %s21, 0
      %p84 = por %p82, %p83
      %p85 = scmp.ne.s32.totalorder %s71, %s72
      %p86 = scmp.eq.s32.totalorder %s22, 1
      %p87 = por %p85, %p86
      %p89 = scmp.ne.s32.totalorder %s72, %s88
      %p90 = scmp.eq.s32.totalorder %s22, 0
      %p91 = por %p89, %p90
      %s92 = ssub.s32 %s23, %s35
      %p93 = scmp.eq.s32.totalorder %s92, 0
      %s95 = sadd.s32 %s94, 1
      %s96 = scalar_select %p93, %s94, %s95
      %p99 = pneg %p93
      %p100 = scmp.eq.s32.totalorder %s16, 1
      %p101 = por %p99, %p100
      %p102 = scmp.ne.s32.totalorder %s94, %s97
      %p103 = scmp.eq.s32.totalorder %s16, 0
      %p104 = por %p102, %p103
      %p105 = scmp.ne.s32.totalorder %s94, %s97
      %p106 = scmp.eq.s32.totalorder %s21, 1
      %p107 = por %p105, %p106
      %p108 = scmp.ne.s32.totalorder %s97, %s98
      %p109 = scmp.eq.s32.totalorder %s21, 0
      %p110 = por %p108, %p109
      %p111 = scmp.ne.s32.totalorder %s97, %s98
      %p112 = scmp.eq.s32.totalorder %s22, 1
      %p113 = por %p111, %p112
      %p115 = scmp.ne.s32.totalorder %s98, %s114
      %p116 = scmp.eq.s32.totalorder %s22, 0
      %p117 = por %p115, %p116
      %s118 = ssub.s32 %s23, %s35
      %p119 = scmp.eq.s32.totalorder %s118, 0
      %s121 = sadd.s32 %s120, 1
      %s122 = scalar_select %p119, %s120, %s121
      %p125 = pneg %p119
      %p126 = scmp.eq.s32.totalorder %s16, 1
      %p127 = por %p125, %p126
      %p128 = scmp.ne.s32.totalorder %s120, %s123
      %p129 = scmp.eq.s32.totalorder %s16, 0
      %p130 = por %p128, %p129
      %p131 = scmp.ne.s32.totalorder %s120, %s123
      %p132 = scmp.eq.s32.totalorder %s21, 1
      %p133 = por %p131, %p132
      %p134 = scmp.ne.s32.totalorder %s123, %s124
      %p135 = scmp.eq.s32.totalorder %s21, 0
      %p136 = por %p134, %p135
      %p137 = scmp.ne.s32.totalorder %s123, %s124
      %p138 = scmp.eq.s32.totalorder %s22, 1
      %p139 = por %p137, %p138
      %p141 = scmp.ne.s32.totalorder %s124, %s140
      %p142 = scmp.eq.s32.totalorder %s22, 0
      %p143 = por %p141, %p142
      %p144 = scmp.le.s32.totalorder 1, %s16
      %p145 = scmp.lt.s32.totalorder %s16, 3
      %p146 = pnand %p144, %p145
      %p147 = pneg %p146
      // Predicated region
      $region9: #{tpu_custom_call.1} parent=5 // pred_check
        _
      $region10: #{tpu_custom_call.1} parent=5 // pred_check_branch
        %149 = sbr.rel (%p146) target = $region12
      $region11: #{tpu_custom_call.1} parent=5 // pred_region
        %s150 = ssub.s32 %s16, 1
      $region12: #{tpu_custom_call.1} parent=5 // pred_fallthru
        _
      %p151 = scmp.lt.s32.totalorder %s16, 2
      // Predicated region
      $region13: #{tpu_custom_call.1} parent=5 // pred_check
        %p152 = pneg %p151
      $region14: #{tpu_custom_call.1} parent=5 // pred_check_branch
        %154 = sbr.rel (%p152) target = $region16
      $region15: #{tpu_custom_call.1} parent=5 // pred_region
        // Predicated region
        $region17: #{tpu_custom_call.1} parent=15 // pred_check
          %p155 = pneg %p50
        $region18: #{tpu_custom_call.1} parent=15 // pred_check_branch
          %157 = sbr.rel (%p155) target = $region20
        $region19: #{tpu_custom_call.1} parent=15 // pred_region
          %s158 = sand.u32 %s40, 1
          %s159 = scalar_lea.sflag [#allocation3], %s158
          %s160 = sand.u32 %s40, 1
          %s161 = smul.addr %s160, 8
          %s162 = scalar_lea.vmem [#allocation2], %s161
          %s163 = smul.u32 2, %s24
          %165 = vsyncadd %s159, 0
          %s166 = smul.addr %s23, 2
          %s167 = sadd.s32 %s163, %s166
          %s168 = smul.addr %s167, 4
          %s169 = scalar_lea.hbm %s0, %s168
          %s171 = sshll.u32 %s169, 4
          %s172 = int_to_ptr.hbm [resolvable:$true] %s171
          %s173 = sshll.u32 %s162, 4
          %s174 = int_to_ptr.vmem [resolvable:$true] %s173
          %176 = dma.hbm_to_vmem [thread:$0]  %s172, 128, %s174, %s159
        $region20: #{tpu_custom_call.1} parent=15 // pred_fallthru
          _
        // Predicated region
        $region21: #{tpu_custom_call.1} parent=15 // pred_check
          %p177 = pneg %p78
        $region22: #{tpu_custom_call.1} parent=15 // pred_check_branch
          %179 = sbr.rel (%p177) target = $region24
        $region23: #{tpu_custom_call.1} parent=15 // pred_region
          %s180 = sand.u32 %s68, 1
          %s181 = scalar_lea.sflag [#allocation5], %s180
          %s182 = sand.u32 %s68, 1
          %s183 = smul.addr %s182, 2
          %s184 = scalar_lea.vmem [#allocation4], %s183
          %s185 = smul.u32 2, %s24
          %187 = vsyncadd %s181, 0
          %s188 = smul.addr %s23, 2
          %s189 = sadd.s32 %s185, %s188
          %s190 = scalar_lea.hbm %s1, %s189
          %s192 = sshll.u32 %s190, 4
          %s193 = int_to_ptr.hbm [resolvable:$true] %s192
          %s194 = sshll.u32 %s184, 4
          %s195 = int_to_ptr.vmem [resolvable:$true] %s194
          %197 = dma.hbm_to_vmem [thread:$0]  %s193, 32, %s195, %s181
        $region24: #{tpu_custom_call.1} parent=15 // pred_fallthru
          _
      $region16: #{tpu_custom_call.1} parent=5 // pred_fallthru
        _
      %p198 = scmp.le.s32.totalorder 1, %s16
      %p199 = scmp.lt.s32.totalorder %s16, 3
      %p200 = pnand %p198, %p199
      %p201 = pneg %p200
      // Predicated region
      $region25: #{tpu_custom_call.1} parent=5 // pred_check
        _
      $region26: #{tpu_custom_call.1} parent=5 // pred_check_branch
        %203 = sbr.rel (%p200) target = $region28
      $region27: #{tpu_custom_call.1} parent=5 // pred_region
        %s204 = ssub.s32 %s16, 1
        %s205 = sand.u32 %s43, 1
        %s206 = scalar_lea.sflag [#allocation3], %s205
        %s207 = sand.u32 %s43, 1
        %s208 = smul.addr %s207, 8
        %s209 = scalar_lea.vmem [#allocation2], %s208
        // Predicated region
        $region29: #{tpu_custom_call.1} parent=27 // pred_check
          %p210 = pneg %p56
        $region30: #{tpu_custom_call.1} parent=27 // pred_check_branch
          %212 = sbr.rel (%p210) target = $region32
        $region31: #{tpu_custom_call.1} parent=27 // pred_region
          %214 = dma.done %s206, 128
        $region32: #{tpu_custom_call.1} parent=27 // pred_fallthru
          _
        %s215 = sand.u32 %s71, 1
        %s216 = scalar_lea.sflag [#allocation5], %s215
        %s217 = sand.u32 %s71, 1
        %s218 = smul.addr %s217, 2
        %s219 = scalar_lea.vmem [#allocation4], %s218
        // Predicated region
        $region33: #{tpu_custom_call.1} parent=27 // pred_check
          %p220 = pneg %p84
        $region34: #{tpu_custom_call.1} parent=27 // pred_check_branch
          %222 = sbr.rel (%p220) target = $region36
        $region35: #{tpu_custom_call.1} parent=27 // pred_region
          %224 = dma.done %s216, 32
        $region36: #{tpu_custom_call.1} parent=27 // pred_fallthru
          _
        %s225 = sand.u32 %s43, 1
        %s226 = scalar_lea.sflag [#allocation3], %s225
        %s227 = sand.u32 %s43, 1
        %s228 = smul.addr %s227, 8
        %s229 = scalar_lea.vmem [#allocation2], %s228
        %p230 = pneg %p56
        %p231 = pneg %p53
        %s232 = sand.u32 %s71, 1
        %s233 = scalar_lea.sflag [#allocation5], %s232
        %s234 = sand.u32 %s71, 1
        %s235 = smul.addr %s234, 2
        %s236 = scalar_lea.vmem [#allocation4], %s235
        %p237 = pneg %p84
        %p238 = pneg %p81
        %p239 = pneg %p110
        %p240 = pneg %p107
        %p241 = scmp.lt.s32.totalorder %s25, 1
        %s242 = scalar_select %p241, %s25, 1
        %s243 = smul.addr %s242, 4
        %s244 = scalar_lea.vmem %s2, %s243
        %p245 = pneg %p136
        %p246 = pneg %p133
        %p247 = scmp.lt.s32.totalorder %s25, 1
        %s248 = scalar_select %p247, %s25, 1
        %s249 = smul.addr %s248, 4
        %s250 = scalar_lea.vmem %s3, %s249
        %s251 = smul.u32 2, %s26
        %s252 = smul.u32 2, %s26
        %p253 = scmp.lt.s32.totalorder %s25, 1
        %s254 = scalar_select %p253, %s25, 1
        %s255 = smul.addr %s254, 4
        %s256 = scalar_lea.vmem %s2, %s255
        %p257 = scmp.lt.s32.totalorder %s25, 1
        %s258 = scalar_select %p257, %s25, 1
        %s259 = smul.addr %s258, 4
        %s260 = scalar_lea.vmem %s3, %s259
        %p261 = scmp.eq.s32.totalorder %s26, 0
        // Predicated region
        $region37: #{tpu_custom_call.1} parent=27 // pred_check
          %p262 = pneg %p261
        $region38: #{tpu_custom_call.1} parent=27 // pred_check_branch
          %264 = sbr.rel (%p262) target = $region40
        $region39: #{tpu_custom_call.1} parent=27 // pred_region
          %vm265 = vcmask 3072
          %266 = vst.msk [vmem:[%s256] sm:$0xf] %vm265, 0.0
          %267 = vst.msk [vmem:[%s260] sm:$0xf] %vm265, 0.0
        $region40: #{tpu_custom_call.1} parent=27 // pred_fallthru
          _
        %v268 = vld [vmem:[%s209] sm:$0xff]
        %v269 = vld [vmem:[%s219] sm:$0x3]
        %271 = vst [vmem:[#allocation1] ss:$2 sm:$0xff] %v268
        %v272 = vld.sshfl [vmem:[#allocation1] sm:$0xff pattern:$0x75316420]
        %v273 = vld.sshfl [vmem:[#allocation1 + $0x8] sm:$0xff pattern:$0x75316420]
        %vm276 = vcmask 1043456
        %v277 = vsel %vm276, %v272, -inf
        %v278 = vrot.slane %v277, 4
        %v279 = vmax.f32 %v277, %v278
        %v280 = vrot.slane %v279, 2
        %v281 = vmax.f32 %v279, %v280
        %v282 = vrot.slane %v281, 1
        %v283 = vmax.f32 %v281, %v282
        %v284 = vsel %vm276, %v273, -inf
        %v285 = vrot.slane %v284, 4
        %v286 = vmax.f32 %v284, %v285
        %v287 = vrot.slane %v286, 2
        %v288 = vmax.f32 %v286, %v287
        %v289 = vrot.slane %v288, 1
        %v290 = vmax.f32 %v288, %v289
        %v293 = vrot.slane %v290, 4
        %v294 = vsel %vm276, %v283, %v293
        %v296 = vsub.f32 %v268, %v294
        %v297 = vmul.f32 %v296, 1.442695
        %v298 = vpow.pop %v297
        %300 = vst [vmem:[#allocation1] ss:$2 sm:$0xff] %v298
        %v301 = vld.sshfl [vmem:[#allocation1] sm:$0xff pattern:$0x75316420]
        %v302 = vld.sshfl [vmem:[#allocation1 + $0x8] sm:$0xff pattern:$0x75316420]
        %v305 = vsel %vm276, %v301, 0.0
        %v306 = vrot.slane %v305, 4
        %v307 = vadd.f32 %v305, %v306
        %v308 = vrot.slane %v307, 2
        %v309 = vadd.f32 %v307, %v308
        %v310 = vrot.slane %v309, 1
        %v311 = vadd.f32 %v309, %v310
        %v312 = vsel %vm276, %v302, 0.0
        %v313 = vrot.slane %v312, 4
        %v314 = vadd.f32 %v312, %v313
        %v315 = vrot.slane %v314, 2
        %v316 = vadd.f32 %v314, %v315
        %v317 = vrot.slane %v316, 1
        %v318 = vadd.f32 %v316, %v317
        %v319 = vrcp.pop %v311
        %v320 = vrcp.pop %v318
        %v323 = vrot.slane %v320, 4
        %v324 = vsel %vm276, %v319, %v323
        %v326 = vmul.f32 %v298, %v324
        %v327 = vlaneseq
        %v328 = vshrl.u32 %v327, 7
        %v329 = vperm.slane %v269, 0
        %v330 = vperm.slane %v269, 1
        %vm331 = vcmp.eq.s32.totalorder %v328, %v329
        %vm332 = vcmp.eq.s32.totalorder %v328, %v330
        %334 = vst [vmem:[#allocation1] ss:$2 sm:$0xff] %v326
        %v335 = vld.sshfl [vmem:[#allocation1] sm:$0xff pattern:$0x75316420]
        %v336 = vld.sshfl [vmem:[#allocation1 + $0x8] sm:$0xff pattern:$0x75316420]
        %v339 = vsel %vm331, %v335, 0.0
        %v340 = vsel %vm332, %v336, 0.0
        %v341 = vsel %vm331, 1, 0
        %v342 = vsel %vm332, 1, 0
        %v343 = vcvt.s32.f32 %v341
        %v344 = vcvt.s32.f32 %v342
        %v347 = vrot.slane %v344, 4
        %v348 = vsel %vm276, %v343, %v347
        %v350 = vadd.f32 %v326, %v348
        %v351 = vld [vmem:[%s256] sm:$0xf]
        %v352 = vsel %vm276, %v339, 0.0
        %v353 = vsel %vm276, %v340, 0.0
        %v354 = vadd.f32 %v352, %v353
        %355 = vadd.xlane.f32.xlu0 %v354
        %v356 = vpop.xlane.xlu0 %355
        %v357 = vadd.f32 %v351, %v356
        %vm358 = vcmask 3072
        %359 = vst.msk [vmem:[%s256] sm:$0xf] %vm358, %v357
        %v360 = vld [vmem:[%s260] sm:$0xf]
        %362 = vst [vmem:[#allocation1] ss:$2 sm:$0xff] %v350
        %v363 = vld.sshfl [vmem:[#allocation1] sm:$0xff pattern:$0x75316420]
        %v364 = vld.sshfl [vmem:[#allocation1 + $0x8] sm:$0xff pattern:$0x75316420]
        %v367 = vsel %vm276, %v363, 0.0
        %v368 = vsel %vm276, %v364, 0.0
        %v369 = vadd.f32 %v367, %v368
        %370 = vadd.xlane.f32.xlu0 %v369
        %v371 = vpop.xlane.xlu0 %370
        %v372 = vadd.f32 %v360, %v371
        %373 = vst.msk [vmem:[%s260] sm:$0xf] %vm358, %v372
        // Predicated region
        $region41: #{tpu_custom_call.1} parent=27 // pred_check
          %p374 = pneg %p261
        $region42: #{tpu_custom_call.1} parent=27 // pred_check_branch
          %376 = sbr.rel (%p374) target = $region44
        $region43: #{tpu_custom_call.1} parent=27 // pred_region
          %v377 = vld [vmem:[%s260] sm:$0xf]
          %v378 = vld [vmem:[%s256] sm:$0xf]
          %v379 = vsub.f32 %v377, %v378
          %380 = vst.msk [vmem:[%s260] sm:$0xf] %vm358, %v379
        $region44: #{tpu_custom_call.1} parent=27 // pred_fallthru
          _
        %p381 = scmp.lt.s32.totalorder %s25, 1
        %s382 = scalar_select %p381, %s25, 1
        %s383 = smul.addr %s382, 4
        %s384 = scalar_lea.vmem %s2, %s383
        %p385 = scmp.lt.s32.totalorder %s25, 1
        %s386 = scalar_select %p385, %s25, 1
        %s387 = smul.addr %s386, 4
        %s388 = scalar_lea.vmem %s3, %s387
        // Predicated region
        $region45: #{tpu_custom_call.1} parent=27 // pred_check
          %p389 = pneg %p107
        $region46: #{tpu_custom_call.1} parent=27 // pred_check_branch
          %391 = sbr.rel (%p389) target = $region48
        $region47: #{tpu_custom_call.1} parent=27 // pred_region
          _
        $region48: #{tpu_custom_call.1} parent=27 // pred_fallthru
          _
        // Predicated region
        $region49: #{tpu_custom_call.1} parent=27 // pred_check
          %p392 = pneg %p133
        $region50: #{tpu_custom_call.1} parent=27 // pred_check_branch
          %394 = sbr.rel (%p392) target = $region52
        $region51: #{tpu_custom_call.1} parent=27 // pred_region
          _
        $region52: #{tpu_custom_call.1} parent=27 // pred_fallthru
          _
      $region28: #{tpu_custom_call.1} parent=5 // pred_fallthru
        _
      %p395 = scmp.le.s32.totalorder 2, %s16
      // Predicated region
      $region53: #{tpu_custom_call.1} parent=5 // pred_check
        %p396 = pneg %p395
      $region54: #{tpu_custom_call.1} parent=5 // pred_check_branch
        %398 = sbr.rel (%p396) target = $region56
      $region55: #{tpu_custom_call.1} parent=5 // pred_region
        %s399 = ssub.s32 %s16, 2
        // Predicated region
        $region57: #{tpu_custom_call.1} parent=55 // pred_check
          %p400 = pneg %p113
        $region58: #{tpu_custom_call.1} parent=55 // pred_check_branch
          %402 = sbr.rel (%p400) target = $region60
        $region59: #{tpu_custom_call.1} parent=55 // pred_region
          %p403 = scmp.lt.s32.totalorder %s27, 1
          %s404 = scalar_select %p403, %s27, 1
          %s405 = smul.addr %s404, 4
          %s406 = scalar_lea.vmem %s2, %s405
        $region60: #{tpu_custom_call.1} parent=55 // pred_fallthru
          _
        // Predicated region
        $region61: #{tpu_custom_call.1} parent=55 // pred_check
          %p407 = pneg %p139
        $region62: #{tpu_custom_call.1} parent=55 // pred_check_branch
          %409 = sbr.rel (%p407) target = $region64
        $region63: #{tpu_custom_call.1} parent=55 // pred_region
          %p410 = scmp.lt.s32.totalorder %s27, 1
          %s411 = scalar_select %p410, %s27, 1
          %s412 = smul.addr %s411, 4
          %s413 = scalar_lea.vmem %s3, %s412
        $region64: #{tpu_custom_call.1} parent=55 // pred_fallthru
          _
      $region56: #{tpu_custom_call.1} parent=5 // pred_fallthru
        _
    $region6: #{tpu_custom_call.1} parent=1 // loop_footer
      %s20 = sadd.s32 1, %s16
    $region7: #{tpu_custom_call.1} parent=1 // loop_footer_branch
      %15 = sbr.rel target = $region3
    $region8: #{tpu_custom_call.1} parent=1 // loop_exit
      _
    %414 = vsyncpa [#allocation3], 1
    %s415 = scalar_lea.sflag [#allocation3], 1
    %416 = vsyncpa %s415, 1
    %417 = vsyncpa [#allocation5], 1
    %s418 = scalar_lea.sflag [#allocation5], 1
    %419 = vsyncpa %s418, 1

</llo_original>
